<compile_context>
chip_gen: v6e
topology: v6e:2x2x1
jax: 0.10.0
libtpu: 0.0.40
codegen_flags: <defaults>
</compile_context>

<pallas_src>
import jax
import jax.numpy as jnp
from jax.experimental import pallas as pl
from jax.experimental.pallas import tpu as pltpu


_LANE_CANDIDATES = (8192, 4096, 2048, 1024, 512, 256, 128)
_MAX_DMA_CHUNKS = 8     # concurrent DMAs (start all, wait all)
_ROW_ALIGN = 8          # chunk row boundaries on (8, 128) tile edges


def _choose_layout(total):
    """Lane-dense (rows, lanes) factorization of the flat element count."""
    if total % 128 == 0:
        for lanes in _LANE_CANDIDATES:
            if total % lanes == 0:
                return total // lanes, lanes
    # Unaligned total: one contiguous row.  The DMA engine copies raw
    # contiguous bytes, so lane alignment is irrelevant here; we only lose
    # multi-chunk overlap (rare for NCHW activations).
    return 1, total


def _row_chunks(rows, max_chunks=_MAX_DMA_CHUNKS, align=_ROW_ALIGN):
    """Split `rows` into <= max_chunks contiguous, tile-aligned row ranges."""
    n = max(1, min(max_chunks, rows))
    step = -(-rows // n)                       # ceil division
    step = -(-step // align) * align           # round up to sublane-tile edge
    chunks = []
    start = 0
    while start < rows:
        size = min(step, rows - start)
        chunks.append((start, size))
        start += size
    return tuple(chunks)


def _make_dma_copy_kernel(chunks):
    """Kernel: issue one async HBM->HBM copy per chunk, then wait on all."""

    def kernel(x_hbm, o_hbm, sem):
        copies = []
        for k, (start, size) in enumerate(chunks):   # static Python unroll
            cp = pltpu.make_async_copy(
                x_hbm.at[pl.ds(start, size), :],
                o_hbm.at[pl.ds(start, size), :],
                sem.at[k],
            )
            cp.start()
            copies.append(cp)
        for cp in copies:
            cp.wait()

    return kernel


def pixel_shuffle(x, scale_factor=2):
    """Pallas implementation of the (reshape-only) PixelShuffle forward."""
    B, C, H, W = x.shape
    r = scale_factor
    assert C % (r * r) == 0, "channels must be divisible by scale_factor**2"
    # Intentionally a contiguous reshape (matches the bwai module), NOT the
    # torch.nn.PixelShuffle (C/r^2, r, r, H, W) -> (C/r^2, H, r, W, r) permute.
    out_shape = (B, C // (r * r), H * r, W * r)

    total = B * C * H * W
    itemsize = jnp.dtype(x.dtype).itemsize
    rows, lanes = _choose_layout(total)
    chunks = _row_chunks(rows)

    x2d = x.reshape(rows, lanes)

    y2d = pl.pallas_call(
        _make_dma_copy_kernel(chunks),
        out_shape=jax.ShapeDtypeStruct((rows, lanes), x.dtype),
        in_specs=[pl.BlockSpec(memory_space=pl.ANY)],   # raw HBM ref, no auto-DMA
        out_specs=pl.BlockSpec(memory_space=pl.ANY),    # raw HBM ref, no auto-DMA
        scratch_shapes=[pltpu.SemaphoreType.DMA((len(chunks),))],
        cost_estimate=pl.CostEstimate(
            flops=0,
            transcendentals=0,
            bytes_accessed=2 * total * itemsize,
        ),
    )(x2d)

    # Glue: reinterpret the flat (identical-order) buffer with the new shape.
    return y2d.reshape(out_shape)


if __name__ == "__main__":
    key = jax.random.PRNGKey(0)
    # Small NCHW input consistent with the module: B=2, C=4, H=16, W=16, r=2.
    x = jax.random.normal(key, (2, 4, 16, 16), dtype=jnp.float32)

    scale_factor = 2
    out = pixel_shuffle(x, scale_factor=scale_factor)
    out = jax.block_until_ready(out)

    # Reference: exact semantics of the PyTorch forward (contiguous reshape).
    ref = x.reshape(
        x.shape[0],
        x.shape[1] // scale_factor ** 2,
        x.shape[2] * scale_factor,
        x.shape[3] * scale_factor,
    )

    assert out.shape == (2, 1, 32, 32), out.shape
    assert out.dtype == x.dtype
    assert jnp.array_equal(out, ref), "Pallas output mismatch vs reference"

    print("KERNEL_OK")
</pallas_src>

<mosaic_0001>
module attributes {stable_mosaic.version = 11 : i64} {
  func.func @kernel(%arg0: memref<1x2048xf32, #tpu.memory_space<any>>, %arg1: memref<1x2048xf32, #tpu.memory_space<any>>, %arg2: memref<1x!tpu.dma_semaphore, #tpu.memory_space<semaphore_mem>>) attributes {dimension_semantics = [], scalar_prefetch = 0 : i64, scratch_operands = 1 : i64, tpu.core_type = #tpu.core_type<tc>} {
    %c0_i32 = arith.constant 0 : i32
    %c0_i32_0 = arith.constant 0 : i32
    %c0_i32_1 = arith.constant 0 : i32
    %0 = tpu.memref_slice %arg0[%c0_i32_0, %c0_i32_1] : memref<1x2048xf32, #tpu.memory_space<any>> -> memref<1x2048xf32, #tpu.memory_space<any>>
    %c0_i32_2 = arith.constant 0 : i32
    %c0_i32_3 = arith.constant 0 : i32
    %1 = tpu.memref_slice %arg1[%c0_i32_2, %c0_i32_3] : memref<1x2048xf32, #tpu.memory_space<any>> -> memref<1x2048xf32, #tpu.memory_space<any>>
    %2 = tpu.memref_slice %arg2[%c0_i32] : memref<1x!tpu.dma_semaphore, #tpu.memory_space<semaphore_mem>> -> memref<1x!tpu.dma_semaphore, #tpu.memory_space<semaphore_mem>>
    %3 = tpu.memref_squeeze %2 : memref<1x!tpu.dma_semaphore, #tpu.memory_space<semaphore_mem>> -> memref<!tpu.dma_semaphore, #tpu.memory_space<semaphore_mem>>
    tpu.enqueue_dma source(%0 : memref<1x2048xf32, #tpu.memory_space<any>>) target(%1 : memref<1x2048xf32, #tpu.memory_space<any>>) target_semaphore(%3 : memref<!tpu.dma_semaphore, #tpu.memory_space<semaphore_mem>>)
    %c0_i32_4 = arith.constant 0 : i32
    %c0_i32_5 = arith.constant 0 : i32
    %c0_i32_6 = arith.constant 0 : i32
    %4 = tpu.memref_slice %arg0[%c0_i32_5, %c0_i32_6] : memref<1x2048xf32, #tpu.memory_space<any>> -> memref<1x2048xf32, #tpu.memory_space<any>>
    %c0_i32_7 = arith.constant 0 : i32
    %c0_i32_8 = arith.constant 0 : i32
    %5 = tpu.memref_slice %arg1[%c0_i32_7, %c0_i32_8] : memref<1x2048xf32, #tpu.memory_space<any>> -> memref<1x2048xf32, #tpu.memory_space<any>>
    %6 = tpu.memref_slice %arg2[%c0_i32_4] : memref<1x!tpu.dma_semaphore, #tpu.memory_space<semaphore_mem>> -> memref<1x!tpu.dma_semaphore, #tpu.memory_space<semaphore_mem>>
    %7 = tpu.memref_squeeze %6 : memref<1x!tpu.dma_semaphore, #tpu.memory_space<semaphore_mem>> -> memref<!tpu.dma_semaphore, #tpu.memory_space<semaphore_mem>>
    tpu.wait_dma2 semaphore(%7 : memref<!tpu.dma_semaphore, #tpu.memory_space<semaphore_mem>>) src(%4 : memref<1x2048xf32, #tpu.memory_space<any>>) dst(%5 : memref<1x2048xf32, #tpu.memory_space<any>>)
    return
  }
}

</mosaic_0001>

<llo_original>
// kernel: tpu_custom_call.1
$region0: #{tpu_custom_call.1}
  #allocation0 [shape = 'u32[]', space=smem, size = 0x4, offset = 0x4, fixed_abs, tag = 'smem constant byte address 0x4 - core index']
  #allocation1 [shape = 'u32[144,128]{1,0:T(1,128)}', space=vmem, size = 0x12000, scoped, tag = 'internal scratch']
  #allocation2 [shape = 's32[1]{0}', space=sflag, size = 0x4, scoped, tag = 'scratch operand']
  #allocation3 [shape = 's32[]', space=sflag, size = 0x4, offset = 0, fixed_abs, tag = 'sflag constant byte address 0x0 - dummy sync flag']
  #allocation4 [shape = 'u32[0]{0}', space=smem, size = 0, offset = 0, fixed_abs, tag = 'smem constant byte address 0x0 - null']
  %s0 = inlined_call_operand.hbm [shape: f32[1,2048], index: 0, kind: input, shape index: {}]
  %s1 = inlined_call_operand.hbm [shape: f32[1,2048], index: 1, kind: output, shape index: {}]
  %s2 = sld [smem:[#allocation0]]
  $region2: #{tpu_custom_call.1} parent=0
    _
  %s4 = ssub.s32 1, %s2
  %s5 = scalar_select 0, %s4, %s2
  %s7 = sshll.u32 1, 14
  %s8 = sxor.u32 4294967295, %s7
  %12 = dma.general %s0, 256, %s1, [#allocation2], 131072, [#allocation4], 0, 0
  %s13 = smul.u32 1, 16
  %s14 = sshll.u32 %s13, 4
  %15 = dma.done [#allocation2], %s14
  %16 = vsyncmov [#allocation2]
  %s17 = vpop.sfrf %16
  %p18 = scmp.eq.s32.totalorder %s17, 0
  %p19 = pneg %p18
  %21 = shalt.err (%p19)

</llo_original>
